<compile_context>
chip_gen: v6e
topology: v6e:2x2x1
jax: 0.10.0
libtpu: 0.0.40
codegen_flags: <defaults>
</compile_context>

<pallas_src>
import math

import jax
import jax.numpy as jnp
from jax.experimental import pallas as pl
from jax.experimental.pallas import tpu as pltpu


def _round_up(x, m):
    return (x + m - 1) // m * m


def _time_embedding_kernel(t_ref, freq_ref, phase_ref, w1_ref, b1_ref,
                           w2_ref, b2_ref, out_ref):
    # t_ref:     (TB, 1)   f32   timesteps (streamed batch tile)
    # freq_ref:  (1, 2h)   f32   [freqs, freqs]                (resident)
    # phase_ref: (1, 2h)   f32   [0..0, pi/2..pi/2]            (resident)
    # w1_ref:    (2h, C)   bf16  lin1 weight, stored (in, out) (resident)
    # b1_ref:    (1, C)    f32                                  (resident)
    # w2_ref:    (C, C)    bf16  lin2 weight, stored (in, out) (resident)
    # b2_ref:    (1, C)    f32                                  (resident)
    # out_ref:   (TB, C)   f32
    t = t_ref[...]                                              # (TB, 1)
    # One EUP transcendental batch covers both sin and cos halves (cos(x)=sin(x+pi/2)).
    act = jnp.sin(t * freq_ref[...] + phase_ref[...])           # (TB, 2h), f32

    # lin1: bf16 x bf16 on the MXU, f32 accumulate; bias add in f32.
    h = jnp.dot(act.astype(jnp.bfloat16), w1_ref[...],
                preferred_element_type=jnp.float32) + b1_ref[...]
    # Swish in f32; approx reciprocal uses the EUP slot instead of a VPU divide.
    h = h * pl.reciprocal(1.0 + jnp.exp(-h), approx=True)

    # lin2
    out = jnp.dot(h.astype(jnp.bfloat16), w2_ref[...],
                  preferred_element_type=jnp.float32) + b2_ref[...]
    out_ref[...] = out.astype(out_ref.dtype)


def make_constants(n_channels):
    """Build the sinusoidal-embedding constants once (hoisted out of the call path)."""
    half_dim = n_channels // 8
    assert half_dim > 1, "n_channels must be >= 16 so half_dim > 1 (avoids div-by-zero)"
    emb_scale = math.log(10000.0) / (half_dim - 1)
    freqs = jnp.exp(jnp.arange(half_dim, dtype=jnp.float32) * -emb_scale)
    freqs2 = jnp.concatenate([freqs, freqs])[None, :]                        # (1, 2h)
    phase = jnp.concatenate(
        [jnp.zeros((half_dim,), jnp.float32),
         jnp.full((half_dim,), jnp.pi / 2, jnp.float32)])[None, :]           # (1, 2h)
    return freqs2, phase


def prepare_params(params):
    """One-time conversion of master (f32, nn.Linear-shaped) params to kernel layout:
    bf16 weights, (1, C) f32 biases. Done once, not on the per-call path."""
    return {
        "w1": params["w1"].astype(jnp.bfloat16),
        "b1": params["b1"].reshape(1, -1).astype(jnp.float32),
        "w2": params["w2"].astype(jnp.bfloat16),
        "b2": params["b2"].reshape(1, -1).astype(jnp.float32),
    }


def _vmem_limit_bytes(tb, n_channels, two_h):
    """Scoped-VMEM budget from actual (8,128)-padded tiles + headroom."""
    def padded(r, c, itemsize):
        return _round_up(r, 8) * _round_up(c, 128) * itemsize
    resident = (2 * padded(1, two_h, 4)                 # freqs, phase (single-buffered)
                + padded(two_h, n_channels, 2)          # w1 bf16
                + padded(n_channels, n_channels, 2)     # w2 bf16
                + 2 * padded(1, n_channels, 4))         # b1, b2
    streamed = 2 * (padded(tb, 1, 4)                    # t, double-buffered
                    + padded(tb, n_channels, 4))        # out, double-buffered
    needed = resident + streamed
    return min(64 << 20, max(16 << 20, int(needed * 1.5)))


def time_embedding(t, prepared_params, n_channels, constants=None, *,
                   max_batch_tile=512):
    """Pallas forward of TimeEmbedding. t: (B,) float32. prepared_params from
    prepare_params(); constants from make_constants() (built once, reused)."""
    half_dim = n_channels // 8
    two_h = 2 * half_dim
    if constants is None:
        constants = make_constants(n_channels)
    freqs2, phase = constants

    w1 = prepared_params["w1"]
    b1 = prepared_params["b1"]
    w2 = prepared_params["w2"]
    b2 = prepared_params["b2"]

    B = t.shape[0]
    t2 = t.astype(jnp.float32).reshape(B, 1)

    # Batch tile: multiple of 8 sublanes, capped at max_batch_tile. For B >= 16 we pick
    # tb so the grid has >= 2 points, letting v7x's 2 TensorCores split the batch.
    if B >= 16:
        tb = min(max_batch_tile, _round_up((B + 1) // 2, 8))
    else:
        tb = min(max_batch_tile, _round_up(B, 8))
    b_pad = _round_up(B, tb)
    if b_pad != B:
        t2 = jnp.pad(t2, ((0, b_pad - B), (0, 0)))   # padded rows sliced off at the end
    grid = (b_pad // tb,)

    resident = dict(pipeline_mode=pl.Buffered(1))    # block never changes -> 1 buffer

    out = pl.pallas_call(
        _time_embedding_kernel,
        out_shape=jax.ShapeDtypeStruct((b_pad, n_channels), jnp.float32),
        grid_spec=pltpu.PrefetchScalarGridSpec(
            num_scalar_prefetch=0,
            grid=grid,
            in_specs=[
                pl.BlockSpec((tb, 1), lambda i: (i, 0)),                      # t
                pl.BlockSpec((1, two_h), lambda i: (0, 0), **resident),       # freqs
                pl.BlockSpec((1, two_h), lambda i: (0, 0), **resident),       # phase
                pl.BlockSpec((two_h, n_channels), lambda i: (0, 0), **resident),      # w1
                pl.BlockSpec((1, n_channels), lambda i: (0, 0), **resident),          # b1
                pl.BlockSpec((n_channels, n_channels), lambda i: (0, 0), **resident), # w2
                pl.BlockSpec((1, n_channels), lambda i: (0, 0), **resident),          # b2
            ],
            out_specs=pl.BlockSpec((tb, n_channels), lambda i: (i, 0)),
        ),
        compiler_params=pltpu.CompilerParams(
            dimension_semantics=("parallel",),   # lets v7x's 2 TCs split the batch
            vmem_limit_bytes=_vmem_limit_bytes(tb, n_channels, two_h),
        ),
    )(t2, freqs2, phase, w1, b1, w2, b2)
    return out[:B]


def init_params(key, n_channels):
    """Deterministic f32 master params matching nn.Linear shapes (stored as (in, out))."""
    in1 = n_channels // 4
    k1, k2, k3, k4 = jax.random.split(key, 4)
    lim1 = 1.0 / math.sqrt(in1)
    lim2 = 1.0 / math.sqrt(n_channels)
    return {
        "w1": jax.random.uniform(k1, (in1, n_channels), jnp.float32, -lim1, lim1),
        "b1": jax.random.uniform(k2, (n_channels,), jnp.float32, -lim1, lim1),
        "w2": jax.random.uniform(k3, (n_channels, n_channels), jnp.float32, -lim2, lim2),
        "b2": jax.random.uniform(k4, (n_channels,), jnp.float32, -lim2, lim2),
    }


def time_embedding_ref(t, params, n_channels):
    """Pure-JAX f32 reference mirroring the PyTorch forward exactly."""
    half_dim = n_channels // 8
    emb_scale = math.log(10000.0) / (half_dim - 1)
    freqs = jnp.exp(jnp.arange(half_dim, dtype=jnp.float32) * -emb_scale)
    emb = t[:, None] * freqs[None, :]
    emb = jnp.concatenate([jnp.sin(emb), jnp.cos(emb)], axis=1)
    h = emb @ params["w1"] + params["b1"]
    h = h * jax.nn.sigmoid(h)
    return h @ params["w2"] + params["b2"]


if __name__ == "__main__":
    n_channels = 128   # -> half_dim = 16, lin1: 32 -> 128, lin2: 128 -> 128
    batch = 8

    key = jax.random.PRNGKey(0)
    k_params, k_t = jax.random.split(key)
    params = init_params(k_params, n_channels)
    t = jax.random.uniform(k_t, (batch,), jnp.float32, 0.0, 1000.0)

    constants = make_constants(n_channels)   # built once, reused every call
    prepared = prepare_params(params)        # bf16 weights + (1,C) biases, built once

    out = time_embedding(t, prepared, n_channels, constants)
    out = jax.block_until_ready(out)

    ref = time_embedding_ref(t, params, n_channels)
    assert out.shape == (batch, n_channels)
    # bf16 weights/activations on the MXU -> bf16-level agreement with the f32 reference.
    assert jnp.allclose(out, ref, atol=2e-2, rtol=2e-2), "mismatch vs reference"

    print("KERNEL_OK")
</pallas_src>

<mosaic_0001>
module attributes {stable_mosaic.version = 11 : i64} {
  func.func @_time_embedding_kernel(%arg0: i32, %arg1: memref<8x1xf32, #tpu.memory_space<vmem>>, %arg2: memref<1x32xf32, #tpu.memory_space<vmem>>, %arg3: memref<1x32xf32, #tpu.memory_space<vmem>>, %arg4: memref<32x128xbf16, #tpu.memory_space<vmem>>, %arg5: memref<1x128xf32, #tpu.memory_space<vmem>>, %arg6: memref<128x128xbf16, #tpu.memory_space<vmem>>, %arg7: memref<1x128xf32, #tpu.memory_space<vmem>>, %arg8: memref<8x128xf32, #tpu.memory_space<vmem>>) attributes {dimension_semantics = [#tpu.dimension_semantics<parallel>], iteration_bounds = array<i64: 1>, scalar_prefetch = 0 : i64, scratch_operands = 0 : i64, tpu.core_type = #tpu.core_type<tc>, window_params = [{transform_indices = @transform_0, window_bounds = array<i64: 8, 1>}, {pipeline_mode = #tpu.pipeline_mode<synchronous>, transform_indices = @transform_1, window_bounds = array<i64: 1, 32>}, {pipeline_mode = #tpu.pipeline_mode<synchronous>, transform_indices = @transform_2, window_bounds = array<i64: 1, 32>}, {pipeline_mode = #tpu.pipeline_mode<synchronous>, transform_indices = @transform_3, window_bounds = array<i64: 32, 128>}, {pipeline_mode = #tpu.pipeline_mode<synchronous>, transform_indices = @transform_4, window_bounds = array<i64: 1, 128>}, {pipeline_mode = #tpu.pipeline_mode<synchronous>, transform_indices = @transform_5, window_bounds = array<i64: 128, 128>}, {pipeline_mode = #tpu.pipeline_mode<synchronous>, transform_indices = @transform_6, window_bounds = array<i64: 1, 128>}, {transform_indices = @transform_7, window_bounds = array<i64: 8, 128>}]} {
    %c0 = arith.constant 0 : index
    %c0_0 = arith.constant 0 : index
    %0 = vector.load %arg1[%c0, %c0_0] : memref<8x1xf32, #tpu.memory_space<vmem>>, vector<8x1xf32>
    %c0_1 = arith.constant 0 : index
    %c0_2 = arith.constant 0 : index
    %1 = vector.load %arg2[%c0_1, %c0_2] : memref<1x32xf32, #tpu.memory_space<vmem>>, vector<1x32xf32>
    %2 = vector.broadcast %0 : vector<8x1xf32> to vector<8x32xf32>
    %3 = vector.broadcast %1 : vector<1x32xf32> to vector<8x32xf32>
    %4 = arith.mulf %2, %3 : vector<8x32xf32>
    %c0_3 = arith.constant 0 : index
    %c0_4 = arith.constant 0 : index
    %5 = vector.load %arg3[%c0_3, %c0_4] : memref<1x32xf32, #tpu.memory_space<vmem>>, vector<1x32xf32>
    %6 = vector.broadcast %5 : vector<1x32xf32> to vector<8x32xf32>
    %7 = arith.addf %4, %6 : vector<8x32xf32>
    %8 = math.sin %7 : vector<8x32xf32>
    %9 = arith.truncf %8 : vector<8x32xf32> to vector<8x32xbf16>
    %c0_5 = arith.constant 0 : index
    %c0_6 = arith.constant 0 : index
    %10 = vector.load %arg4[%c0_5, %c0_6] : memref<32x128xbf16, #tpu.memory_space<vmem>>, vector<32x128xbf16>
    %cst = arith.constant dense<0.000000e+00> : vector<8x128xf32>
    %11 = tpu.matmul %9, %10, %cst {dimension_numbers = #tpu.dot_dimension_numbers<[1], [0], [0], [1], [0, 0, 1, 1], [], []>} : vector<8x32xbf16>, vector<32x128xbf16>, vector<8x128xf32> -> vector<8x128xf32>
    %c0_7 = arith.constant 0 : index
    %c0_8 = arith.constant 0 : index
    %12 = vector.load %arg5[%c0_7, %c0_8] : memref<1x128xf32, #tpu.memory_space<vmem>>, vector<1x128xf32>
    %13 = vector.broadcast %12 : vector<1x128xf32> to vector<8x128xf32>
    %14 = arith.addf %11, %13 : vector<8x128xf32>
    %cst_9 = arith.constant 0.000000e+00 : f32
    %15 = vector.broadcast %cst_9 : f32 to vector<8x128xf32>
    %16 = arith.subf %15, %14 : vector<8x128xf32>
    %17 = math.exp %16 : vector<8x128xf32>
    %cst_10 = arith.constant 1.000000e+00 : f32
    %18 = vector.broadcast %cst_10 : f32 to vector<8x128xf32>
    %19 = arith.addf %18, %17 : vector<8x128xf32>
    %20 = tpu.reciprocal %19 {approx = true} : vector<8x128xf32> -> vector<8x128xf32>
    %21 = arith.mulf %14, %20 : vector<8x128xf32>
    %22 = arith.truncf %21 : vector<8x128xf32> to vector<8x128xbf16>
    %c0_11 = arith.constant 0 : index
    %c0_12 = arith.constant 0 : index
    %23 = vector.load %arg6[%c0_11, %c0_12] : memref<128x128xbf16, #tpu.memory_space<vmem>>, vector<128x128xbf16>
    %cst_13 = arith.constant dense<0.000000e+00> : vector<8x128xf32>
    %24 = tpu.matmul %22, %23, %cst_13 {dimension_numbers = #tpu.dot_dimension_numbers<[1], [0], [0], [1], [0, 0, 1, 1], [], []>} : vector<8x128xbf16>, vector<128x128xbf16>, vector<8x128xf32> -> vector<8x128xf32>
    %c0_14 = arith.constant 0 : index
    %c0_15 = arith.constant 0 : index
    %25 = vector.load %arg7[%c0_14, %c0_15] : memref<1x128xf32, #tpu.memory_space<vmem>>, vector<1x128xf32>
    %26 = vector.broadcast %25 : vector<1x128xf32> to vector<8x128xf32>
    %27 = arith.addf %24, %26 : vector<8x128xf32>
    %c0_16 = arith.constant 0 : index
    %c0_17 = arith.constant 0 : index
    %28 = vector.load %arg8[%c0_16, %c0_17] : memref<8x128xf32, #tpu.memory_space<vmem>>, vector<8x128xf32>
    tpu.vector_store %arg8[%c0_16, %c0_17], %27 {strides = array<i32>} : memref<8x128xf32, #tpu.memory_space<vmem>>, vector<8x128xf32>,
    return
  }
  func.func @transform_0(%arg0: i32) -> (i32, i32) {
    %c0_i32 = arith.constant 0 : i32
    %c0_i32_0 = arith.constant 0 : i32
    return %arg0, %c0_i32 : i32, i32
  }
  func.func @transform_1(%arg0: i32) -> (i32, i32) {
    %c0_i32 = arith.constant 0 : i32
    %c0_i32_0 = arith.constant 0 : i32
    %c0_i32_1 = arith.constant 0 : i32
    return %c0_i32, %c0_i32_0 : i32, i32
  }
  func.func @transform_2(%arg0: i32) -> (i32, i32) {
    %c0_i32 = arith.constant 0 : i32
    %c0_i32_0 = arith.constant 0 : i32
    %c0_i32_1 = arith.constant 0 : i32
    return %c0_i32, %c0_i32_0 : i32, i32
  }
  func.func @transform_3(%arg0: i32) -> (i32, i32) {
    %c0_i32 = arith.constant 0 : i32
    %c0_i32_0 = arith.constant 0 : i32
    %c0_i32_1 = arith.constant 0 : i32
    return %c0_i32, %c0_i32_0 : i32, i32
  }
  func.func @transform_4(%arg0: i32) -> (i32, i32) {
    %c0_i32 = arith.constant 0 : i32
    %c0_i32_0 = arith.constant 0 : i32
    %c0_i32_1 = arith.constant 0 : i32
    return %c0_i32, %c0_i32_0 : i32, i32
  }
  func.func @transform_5(%arg0: i32) -> (i32, i32) {
    %c0_i32 = arith.constant 0 : i32
    %c0_i32_0 = arith.constant 0 : i32
    %c0_i32_1 = arith.constant 0 : i32
    return %c0_i32, %c0_i32_0 : i32, i32
  }
  func.func @transform_6(%arg0: i32) -> (i32, i32) {
    %c0_i32 = arith.constant 0 : i32
    %c0_i32_0 = arith.constant 0 : i32
    %c0_i32_1 = arith.constant 0 : i32
    return %c0_i32, %c0_i32_0 : i32, i32
  }
  func.func @transform_7(%arg0: i32) -> (i32, i32) {
    %c0_i32 = arith.constant 0 : i32
    %c0_i32_0 = arith.constant 0 : i32
    return %arg0, %c0_i32 : i32, i32
  }
}

</mosaic_0001>

<llo_original>
// kernel: tpu_custom_call.1
$region0: #{tpu_custom_call.1}
  #allocation0 [shape = 'u32[]', space=smem, size = 0x4, offset = 0x4, fixed_abs, tag = 'smem constant byte address 0x4 - core index']
  #allocation1 [shape = 'u32[144,128]{1,0:T(1,128)}', space=vmem, size = 0x12000, scoped, tag = 'internal scratch']
  %s0 = inlined_call_operand.vmem [shape: f32[8,1], index: 0, kind: input, shape index: {}]
  %s1 = inlined_call_operand.vmem [shape: f32[1,32], index: 1, kind: input, shape index: {}]
  %s2 = inlined_call_operand.vmem [shape: f32[1,32], index: 2, kind: input, shape index: {}]
  %s3 = inlined_call_operand.hbm [shape: bf16[32,128], index: 3, kind: input, shape index: {}]
  %s4 = inlined_call_operand.vmem [shape: f32[1,128], index: 4, kind: input, shape index: {}]
  %s5 = inlined_call_operand.hbm [shape: bf16[128,128], index: 5, kind: input, shape index: {}]
  %s6 = inlined_call_operand.vmem [shape: f32[1,128], index: 6, kind: input, shape index: {}]
  %s7 = inlined_call_operand.hbm [shape: f32[8,128], index: 7, kind: output, shape index: {}]
  %s8 = sld [smem:[#allocation0]]
  $region46: #{tpu_custom_call.1} parent=0
    _
  %s10 = ssub.s32 1, %s8
  %s11 = scalar_select 0, %s10, %s8
  $region1: #{tpu_custom_call.1} parent=0
    #allocation2 [shape = 'u8[8192]{0}', space=vmem, size = 0x2000, scoped, tag = 'input window, operand 3, single buffered']
    #allocation3 [shape = 's32[1]{0}', space=sflag, size = 0x4, scoped, tag = 'scoped memory for tpu_custom_call.1']
    #allocation4 [shape = 's32[1]{0}', space=sflag, size = 0x4, scoped, tag = 'scoped memory for tpu_custom_call.1']
    #allocation5 [shape = 'u8[32768]{0}', space=vmem, size = 0x8000, scoped, tag = 'input window, operand 5, single buffered']
    #allocation6 [shape = 's32[1]{0}', space=sflag, size = 0x4, scoped, tag = 'scoped memory for tpu_custom_call.1']
    #allocation7 [shape = 'u8[4096]{0}', space=vmem, size = 0x1000, scoped, tag = 'output window, operand 0, single buffered']
    %12 = vsyncpa [#allocation3], 0
    %13 = vsyncpa [#allocation6], 0
    %14 = vsyncpa [#allocation4], 0
    // Predicated region
    $region2: #{tpu_custom_call.1} parent=1 // pred_check
      _
    $region3: #{tpu_custom_call.1} parent=1 // pred_check_branch
      %16 = sbr.rel (0) target = $region5
    $region4: #{tpu_custom_call.1} parent=1 // pred_region
      _
    $region5: #{tpu_custom_call.1} parent=1 // pred_fallthru
      _
    // Predicated region
    $region6: #{tpu_custom_call.1} parent=1 // pred_check
      _
    $region7: #{tpu_custom_call.1} parent=1 // pred_check_branch
      %18 = sbr.rel (0) target = $region9
    $region8: #{tpu_custom_call.1} parent=1 // pred_region
      _
    $region9: #{tpu_custom_call.1} parent=1 // pred_fallthru
      _
    // Predicated region
    $region10: #{tpu_custom_call.1} parent=1 // pred_check
      _
    $region11: #{tpu_custom_call.1} parent=1 // pred_check_branch
      %20 = sbr.rel (0) target = $region13
    $region12: #{tpu_custom_call.1} parent=1 // pred_region
      _
    $region13: #{tpu_custom_call.1} parent=1 // pred_fallthru
      _
    // Predicated region
    $region14: #{tpu_custom_call.1} parent=1 // pred_check
      _
    $region15: #{tpu_custom_call.1} parent=1 // pred_check_branch
      %22 = sbr.rel (0) target = $region17
    $region16: #{tpu_custom_call.1} parent=1 // pred_region
      %s24 = ssub.s32 256, 256
      %25 = vsyncadd [#allocation3], %s24
      %s26 = sshll.u32 [#allocation2], 4
      %s27 = int_to_ptr.vmem [resolvable:$true] %s26
      %32 = dma.hbm_to_vmem [thread:$0]  %s3, 256, %s27, [#allocation3], 64, 64, 4
    $region17: #{tpu_custom_call.1} parent=1 // pred_fallthru
      _
    // Predicated region
    $region18: #{tpu_custom_call.1} parent=1 // pred_check
      _
    $region19: #{tpu_custom_call.1} parent=1 // pred_check_branch
      %34 = sbr.rel (0) target = $region21
    $region20: #{tpu_custom_call.1} parent=1 // pred_region
      _
    $region21: #{tpu_custom_call.1} parent=1 // pred_fallthru
      _
    // Predicated region
    $region22: #{tpu_custom_call.1} parent=1 // pred_check
      _
    $region23: #{tpu_custom_call.1} parent=1 // pred_check_branch
      %36 = sbr.rel (0) target = $region25
    $region24: #{tpu_custom_call.1} parent=1 // pred_region
      %s38 = ssub.s32 1024, 1024
      %39 = vsyncadd [#allocation6], %s38
      %s40 = sshll.u32 [#allocation5], 4
      %s41 = int_to_ptr.vmem [resolvable:$true] %s40
      %46 = dma.hbm_to_vmem [thread:$0]  %s5, 1024, %s41, [#allocation6], 64, 64, 4
    $region25: #{tpu_custom_call.1} parent=1 // pred_fallthru
      _
    // Predicated region
    $region26: #{tpu_custom_call.1} parent=1 // pred_check
      _
    $region27: #{tpu_custom_call.1} parent=1 // pred_check_branch
      %48 = sbr.rel (0) target = $region29
    $region28: #{tpu_custom_call.1} parent=1 // pred_region
      _
    $region29: #{tpu_custom_call.1} parent=1 // pred_fallthru
      _
    // Predicated region
    $region30: #{tpu_custom_call.1} parent=1 // pred_check
      _
    $region31: #{tpu_custom_call.1} parent=1 // pred_check_branch
      %50 = sbr.rel (0) target = $region33
    $region32: #{tpu_custom_call.1} parent=1 // pred_region
      %51 = dma.done [#allocation3], 256
    $region33: #{tpu_custom_call.1} parent=1 // pred_fallthru
      _
    // Predicated region
    $region34: #{tpu_custom_call.1} parent=1 // pred_check
      _
    $region35: #{tpu_custom_call.1} parent=1 // pred_check_branch
      %53 = sbr.rel (0) target = $region37
    $region36: #{tpu_custom_call.1} parent=1 // pred_region
      %54 = dma.done [#allocation6], 1024
    $region37: #{tpu_custom_call.1} parent=1 // pred_fallthru
      _
    %v56 = vld [vmem:[%s0] sm:$0xff]
    %v57 = vld [vmem:[%s1] sm:$0x1]
    %59 = vset.pattern.permute.xlu0 0
    %60 = vperm.xlu0 %59, %v56
    %v61 = vpop.permute.xlu0 %60
    %v64 = vlaneseq
    %v65 = vshrl.u32 %v64, 7
    %v66 = vsub.s32 0, %v65
    %v67 = vrot.slane %v57, %v66
    %v69 = vmul.f32 %v61, %v67
    %v70 = vld [vmem:[%s2] sm:$0x1]
    %v72 = vlaneseq
    %v73 = vshrl.u32 %v72, 7
    %v74 = vsub.s32 0, %v73
    %v75 = vrot.slane %v70, %v74
    %v77 = vadd.f32 %v69, %v75
    %v78 = vand.u32 2147483647, %v77
    %vm79 = vcmp.le.f32.partialorder %v78, 0.7853982
    %vm80 = vcmp.lt.s32.totalorder %v77, 0
    %v81 = vand.u32 %v77, 2139095040
    %v82 = vshrl.u32 %v81, 23
    %v83 = vsub.s32 %v82, 127
    %v84 = vand.u32 2147483647, %v77
    %v85 = vand.u32 %v84, 8388607
    %v86 = vor.u32 %v85, 8388608
    %v87 = vsub.s32 0, %v86
    %v88 = vadd.s32 %v83, 1
    %vm89 = vcmp.gt.s32.totalorder %v88, 0
    %v90 = vsel %vm89, %v88, 0
    %v91 = vshrl.u32 %v90, 5
    %v92 = vand.u32 %v90, 31
    %v93 = vsub.s32 32, %v92
    %v94 = vshrl.u32 683565275, %v93
    %v95 = vshll.u32 683565275, %v92
    %v96 = vshrl.u32 2475754826, %v93
    %v97 = vor.u32 %v95, %v96
    %v98 = vshll.u32 2475754826, %v92
    %v99 = vshrl.u32 2131351028, %v93
    %v100 = vor.u32 %v98, %v99
    %v101 = vshll.u32 2131351028, %v92
    %v102 = vshrl.u32 2102212464, %v93
    %v103 = vor.u32 %v101, %v102
    %v104 = vshll.u32 2102212464, %v92
    %v105 = vshrl.u32 920167782, %v93
    %v106 = vor.u32 %v104, %v105
    %v107 = vshll.u32 920167782, %v92
    %v108 = vshrl.u32 1326507024, %v93
    %v109 = vor.u32 %v107, %v108
    %vm110 = vcmp.lt.s32.totalorder %v91, 1
    %vm111 = vcmp.lt.s32.totalorder %v91, 2
    %vm112 = vcmp.lt.s32.totalorder %v91, 3
    %vm113 = vcmp.lt.s32.totalorder %v91, 4
    %v114 = vsel %vm110, %v94, %v97
    %v115 = vsel %vm113, %v103, 2102212464
    %v116 = vsel %vm112, %v100, %v115
    %v117 = vsel %vm111, %v114, %v116
    %v118 = vsel %vm110, %v97, %v100
    %v119 = vsel %vm113, %v106, 920167782
    %v120 = vsel %vm112, %v103, %v119
    %v121 = vsel %vm111, %v118, %v120
    %v122 = vsel %vm110, %v100, %v103
    %v123 = vsel %vm113, %v109, 1326507024
    %v124 = vsel %vm112, %v106, %v123
    %v125 = vsel %vm111, %v122, %v124
    %v126 = vshll.u32 %v86, 8
    %v127 = vmul.u32.u64.compose %v126, %v125
    %v128 = vextract.low.u32 %v127
    %v129 = vextract.high.u32 %v127
    %v130 = vmul.u32.u64.compose %v126, %v121
    %v131 = vextract.low.u32 %v130
    %v132 = vextract.high.u32 %v130
    %v133 = vmul.u32 %v126, %v117
    %v134 = vadd.s32 %v129, %v131
    %vm135 = vc.u32 %v129, %v131
    %v136 = vadd.s32 %v132, 1
    %v137 = vsel %vm135, %v136, %v132
    %v138 = vadd.s32 %v133, %v137
    %v139 = vadd.s32 %v138, 536870912
    %v140 = vshrl.u32 %v139, 30
    %v141 = vshll.u32 %v140, 30
    %v142 = vsub.s32 %v138, %v141
    %vm143 = vcmp.lt.s32.totalorder %v142, 0
    %v144 = vsub.s32 0, %v142
    %v145 = vsel %vm143, %v144, %v142
    %v146 = vclz %v145
    %v147 = vsub.s32 %v146, 2
    %vm148 = vcmp.gt.s32.totalorder 0, %v147
    %v149 = vsel %vm148, 0, %v147
    %v150 = vsub.s32 32, %v149
    %v151 = vshll.u32 %v142, %v149
    %v152 = vshrl.u32 %v134, %v150
    %v153 = vor.u32 %v151, %v152
    %v154 = vsub.s32 4294967266, %v149
    %v155 = vadd.s32 %v154, 127
    %v156 = vshll.u32 %v155, 23
    %v157 = vor.u32 4788187, %v156
    %v158 = vand.u32 2147483647, %v157
    %v160 = vcvt.s32.f32 %v153
    %v161 = vmul.f32 %v160, %v158
    %v162 = vxor.u32 %v161, 2147483648
    %v163 = vsel %vm80, %v162, %v161
    %v164 = vsub.s32 4, %v140
    %v165 = vsel %vm80, %v164, %v140
    %v166 = vsel %vm79, %v77, %v163
    %v167 = vsel %vm79, 0, %v165
    %v168 = vcosq.f32.pop %v166
    %v169 = vsinq.f32.pop %v166
    %vm170 = vweird.f32 %v77
    %v171 = vadd.s32 %v167, 3
    %v172 = vand.u32 %v171, 3
    %vm173 = vcmp.lt.s32.totalorder %v172, 2
    %vm174 = vcmp.eq.s32.totalorder %v172, 0
    %v175 = vxor.u32 %v169, 2147483648
    %v176 = vsel %vm174, %v168, %v175
    %vm177 = vcmp.eq.s32.totalorder %v172, 2
    %v178 = vxor.u32 %v168, 2147483648
    %v179 = vsel %vm177, %v178, %v169
    %v180 = vsel %vm173, %v176, %v179
    %v181 = vsel %vm170, nan, %v180
    %v182 = vpack.c.bf16 %v181, %v181
    %v183 = vld [vmem:[#allocation2] sm:$0xf]
    %v184 = vld [vmem:[#allocation2 + $0x4] sm:$0xf]
    %v185 = vld [vmem:[#allocation2 + $0x8] sm:$0xf]
    %v186 = vld [vmem:[#allocation2 + $0xc] sm:$0xf]
    %v187 = vld [vmem:[%s4] sm:$0x1]
    %v189 = vlaneseq
    %v190 = vshrl.u32 %v189, 7
    %v191 = vsub.s32 0, %v190
    %v192 = vrot.slane %v187, %v191
    %v198 = vunpack.c.l.b16 %v183
    %v199 = vunpack.c.l.b16 %v184
    %v200 = vunpack.c.l.b16 %v185
    %v201 = vunpack.c.l.b16 %v186
    %v202 = vpack.c.b16 %v199, %v198
    %v203 = vpack.c.b16 %v201, %v200
    %vm206 = vcmask 261120
    %v208 = vsel %vm206, %v182, 0
    %210 = vmatprep.subr.bf16.mxu0 0
    %211 = vmatpush1.bf16.msra.mxu0 0
    %212 = vmatprep.subr.bf16.mxu0 0
    %213 = vmatpush1.bf16.msra.mxu0 0
    %214 = vmatprep.subr.bf16.mxu0 0
    %215 = vmatpush1.bf16.msra.mxu0 0
    %216 = vmatprep.subr.bf16.mxu0 0
    %217 = vmatpush1.bf16.msra.mxu0 0
    %218 = vmatprep.subr.bf16.mxu0 0
    %219 = vmatpush1.bf16.msra.mxu0 0
    %220 = vmatprep.subr.bf16.mxu0 0
    %221 = vmatpush1.bf16.msra.mxu0 0
    %222 = vmatprep.subr.bf16.mxu0 0
    %223 = vmatpush1.bf16.msra.mxu0 %v203
    %224 = vmatprep.subr.bf16.mxu0 0
    %225 = vmatpush1.bf16.msra.mxu0 %v202
    %226 = vmatprep.subr.bf16.mxu0 0
    %227 = vmatpush2.bf16.msra.mxu0 0
    %228 = vmatprep.subr.bf16.mxu0 0
    %229 = vmatpush2.bf16.msra.mxu0 0
    %230 = vmatprep.subr.bf16.mxu0 0
    %231 = vmatpush2.bf16.msra.mxu0 0
    %232 = vmatprep.subr.bf16.mxu0 0
    %233 = vmatpush2.bf16.msra.mxu0 0
    %234 = vmatprep.subr.bf16.mxu0 0
    %235 = vmatpush2.bf16.msra.mxu0 0
    %236 = vmatprep.subr.bf16.mxu0 0
    %237 = vmatpush2.bf16.msra.mxu0 0
    %238 = vmatprep.subr.bf16.mxu0 0
    %239 = vmatpush2.bf16.msra.mxu0 0
    %240 = vmatprep.subr.bf16.mxu0 0
    %241 = vmatpush2.bf16.msra.mxu0 0
    %242 = vmatprep.mubr.bf16.mxu0 0
    %243 = vmatmul.mubr.bf16.gmra.mxu0 %v208
    %v244 = vpop.f32.mrf.mxu0
    %v245 = vadd.f32 %v192, %v244
    %v246 = vpop.f32.mrf.mxu0
    %v247 = vpop.f32.mrf.mxu0
    %v248 = vpop.f32.mrf.mxu0
    %249 = vdwg.mxu0
    %v250 = vsub.f32 0.0, %v245
    %v251 = vmul.f32 %v250, 1.442695
    %v252 = vpow.pop %v251
    %v253 = vadd.f32 %v252, 1.0
    %v254 = vrcp.pop %v253
    %v255 = vmul.f32 %v245, %v254
    %v256 = vpack.c.bf16 %v255, %v255
    %v257 = vld [vmem:[#allocation5] sm:$0xf]
    %v258 = vld [vmem:[#allocation5 + $0x4] sm:$0xf]
    %v259 = vld [vmem:[#allocation5 + $0x8] sm:$0xf]
    %v260 = vld [vmem:[#allocation5 + $0xc] sm:$0xf]
    %v261 = vld [vmem:[#allocation5 + $0x10] sm:$0xf]
    %v262 = vld [vmem:[#allocation5 + $0x14] sm:$0xf]
    %v263 = vld [vmem:[#allocation5 + $0x18] sm:$0xf]
    %v264 = vld [vmem:[#allocation5 + $0x1c] sm:$0xf]
    %v265 = vld [vmem:[#allocation5 + $0x20] sm:$0xf]
    %v266 = vld [vmem:[#allocation5 + $0x24] sm:$0xf]
    %v267 = vld [vmem:[#allocation5 + $0x28] sm:$0xf]
    %v268 = vld [vmem:[#allocation5 + $0x2c] sm:$0xf]
    %v269 = vld [vmem:[#allocation5 + $0x30] sm:$0xf]
    %v270 = vld [vmem:[#allocation5 + $0x34] sm:$0xf]
    %v271 = vld [vmem:[#allocation5 + $0x38] sm:$0xf]
    %v272 = vld [vmem:[#allocation5 + $0x3c] sm:$0xf]
    %v273 = vld [vmem:[%s6] sm:$0x1]
    %v275 = vlaneseq
    %v276 = vshrl.u32 %v275, 7
    %v277 = vsub.s32 0, %v276
    %v278 = vrot.slane %v273, %v277
    %v296 = vunpack.c.l.b16 %v257
    %v297 = vunpack.c.l.b16 %v258
    %v298 = vunpack.c.l.b16 %v259
    %v299 = vunpack.c.l.b16 %v260
    %v300 = vunpack.c.l.b16 %v261
    %v301 = vunpack.c.l.b16 %v262
    %v302 = vunpack.c.l.b16 %v263
    %v303 = vunpack.c.l.b16 %v264
    %v304 = vunpack.c.l.b16 %v265
    %v305 = vunpack.c.l.b16 %v266
    %v306 = vunpack.c.l.b16 %v267
    %v307 = vunpack.c.l.b16 %v268
    %v308 = vunpack.c.l.b16 %v269
    %v309 = vunpack.c.l.b16 %v270
    %v310 = vunpack.c.l.b16 %v271
    %v311 = vunpack.c.l.b16 %v272
    %v312 = vpack.c.b16 %v297, %v296
    %v313 = vpack.c.b16 %v299, %v298
    %v314 = vpack.c.b16 %v301, %v300
    %v315 = vpack.c.b16 %v303, %v302
    %v316 = vpack.c.b16 %v305, %v304
    %v317 = vpack.c.b16 %v307, %v306
    %v318 = vpack.c.b16 %v309, %v308
    %v319 = vpack.c.b16 %v311, %v310
    %328 = vmatprep.subr.bf16.mxu0 0
    %329 = vmatpush1.bf16.msra.mxu0 %v319
    %330 = vmatprep.subr.bf16.mxu0 0
    %331 = vmatpush1.bf16.msra.mxu0 %v318
    %332 = vmatprep.subr.bf16.mxu0 0
    %333 = vmatpush1.bf16.msra.mxu0 %v317
    %334 = vmatprep.subr.bf16.mxu0 0
    %335 = vmatpush1.bf16.msra.mxu0 %v316
    %336 = vmatprep.subr.bf16.mxu0 0
    %337 = vmatpush1.bf16.msra.mxu0 %v315
    %338 = vmatprep.subr.bf16.mxu0 0
    %339 = vmatpush1.bf16.msra.mxu0 %v314
    %340 = vmatprep.subr.bf16.mxu0 0
    %341 = vmatpush1.bf16.msra.mxu0 %v313
    %342 = vmatprep.subr.bf16.mxu0 0
    %343 = vmatpush1.bf16.msra.mxu0 %v312
    %344 = vmatprep.subr.bf16.mxu0 0
    %345 = vmatpush2.bf16.msra.mxu0 0
    %346 = vmatprep.subr.bf16.mxu0 0
    %347 = vmatpush2.bf16.msra.mxu0 0
    %348 = vmatprep.subr.bf16.mxu0 0
    %349 = vmatpush2.bf16.msra.mxu0 0
    %350 = vmatprep.subr.bf16.mxu0 0
    %351 = vmatpush2.bf16.msra.mxu0 0
    %352 = vmatprep.subr.bf16.mxu0 0
    %353 = vmatpush2.bf16.msra.mxu0 0
    %354 = vmatprep.subr.bf16.mxu0 0
    %355 = vmatpush2.bf16.msra.mxu0 0
    %356 = vmatprep.subr.bf16.mxu0 0
    %357 = vmatpush2.bf16.msra.mxu0 0
    %358 = vmatprep.subr.bf16.mxu0 0
    %359 = vmatpush2.bf16.msra.mxu0 0
    %360 = vmatprep.mubr.bf16.mxu0 0
    %361 = vmatmul.mubr.bf16.gmra.mxu0 %v256
    %v362 = vpop.f32.mrf.mxu0
    %v363 = vadd.f32 %v278, %v362
    %v364 = vpop.f32.mrf.mxu0
    %v365 = vpop.f32.mrf.mxu0
    %v366 = vpop.f32.mrf.mxu0
    %367 = vdwg.mxu0
    %368 = vst [vmem:[#allocation7] sm:$0xff] %v363
    // Predicated region
    $region38: #{tpu_custom_call.1} parent=1 // pred_check
      _
    $region39: #{tpu_custom_call.1} parent=1 // pred_check_branch
      %370 = sbr.rel (0) target = $region41
    $region40: #{tpu_custom_call.1} parent=1 // pred_region
      %s372 = ssub.s32 128, 128
      %373 = vsyncadd [#allocation4], %s372
      %s375 = sshll.u32 [#allocation7], 4
      %s376 = int_to_ptr.vmem [resolvable:$true] %s375
      %378 = dma.vmem_to_hbm [thread:$0]  %s376, 128, %s7, [#allocation4]
    $region41: #{tpu_custom_call.1} parent=1 // pred_fallthru
      _
    // Predicated region
    $region42: #{tpu_custom_call.1} parent=1 // pred_check
      _
    $region43: #{tpu_custom_call.1} parent=1 // pred_check_branch
      %380 = sbr.rel (0) target = $region45
    $region44: #{tpu_custom_call.1} parent=1 // pred_region
      %381 = dma.done [#allocation4], 128
    $region45: #{tpu_custom_call.1} parent=1 // pred_fallthru
      _
    %382 = vsyncpa [#allocation3], 1
    %383 = vsyncpa [#allocation6], 1
    %384 = vsyncpa [#allocation4], 1

</llo_original>
